<compile_context>
chip_gen: v7x
topology: tpu7x:2x2x1
jax: 0.10.0
libtpu: 0.0.40
codegen_flags: <defaults>
</compile_context>

<pallas_src>
import jax
import jax.numpy as jnp
from jax.experimental import pallas as pl
from jax.experimental.pallas import tpu as pltpu

_LANES = 128           # full vreg lane width -> unmasked stores
_MAX_TILE_ROWS = 1024  # 1024 x 128 x 4B = 512 KiB per buffer; 4 live buffers
                       # (double-buffered in + out) stay well under 32 MiB
                       # scoped VMEM on every generation (v5e/v6e/v7x).


def _copy_kernel(emb_ref, out_ref):
    # Pure identity copy of the current lane-dense tile.
    out_ref[...] = emb_ref[...]


def _sublane_multiple(dtype):
    # Second-to-last block dim must be a multiple of 8 (f32) / 16 (bf16) /
    # 32 (int8) unless the block equals the full array extent.
    itemsize = jnp.dtype(dtype).itemsize
    return max(8, 32 // itemsize)


def learnable_positional_encoding(x, emb):
    """Forward pass of Learnable_Positional_Encoding.

    Args:
      x:   (batch, seq_len, d_model) — ignored, exactly like the PyTorch module.
      emb: (seq_len, d_model) learnable positional embedding.

    Returns:
      (seq_len, d_model) array equal to `emb` (same dtype).
    """
    del x  # PyTorch forward ignores the input.
    seq_len, d_model = emb.shape
    total = seq_len * d_model
    itemsize = jnp.dtype(emb.dtype).itemsize
    cost = pl.CostEstimate(
        flops=0, transcendentals=0, bytes_accessed=2 * total * itemsize
    )

    if total % _LANES == 0:
        # Lane-dense path: view the slab as (rows, 128) so stores use all
        # 128 lanes (no masked vst.msk partial stores).
        rows = total // _LANES
        flat = emb.reshape(rows, _LANES)

        sub = _sublane_multiple(emb.dtype)
        if rows > _MAX_TILE_ROWS and rows % sub == 0:
            tile_rows = _MAX_TILE_ROWS      # large tiles amortize ~600-cyc/step
        else:
            tile_rows = rows                # single full-extent block

        out_flat = pl.pallas_call(
            _copy_kernel,
            out_shape=jax.ShapeDtypeStruct((rows, _LANES), emb.dtype),
            grid=(pl.cdiv(rows, tile_rows),),
            in_specs=[pl.BlockSpec((tile_rows, _LANES), lambda i: (i, 0))],
            out_specs=pl.BlockSpec((tile_rows, _LANES), lambda i: (i, 0)),
            compiler_params=pltpu.CompilerParams(
                dimension_semantics=("parallel",)  # shard rows across v7x TCs
            ),
            cost_estimate=cost,
        )(flat)
        return out_flat.reshape(seq_len, d_model)

    # Fallback (total not a multiple of 128): single full-array block.
    return pl.pallas_call(
        _copy_kernel,
        out_shape=jax.ShapeDtypeStruct((seq_len, d_model), emb.dtype),
        grid=(1,),
        in_specs=[pl.BlockSpec((seq_len, d_model), lambda i: (0, 0))],
        out_specs=pl.BlockSpec((seq_len, d_model), lambda i: (0, 0)),
        compiler_params=pltpu.CompilerParams(
            dimension_semantics=("arbitrary",)
        ),
        cost_estimate=cost,
    )(emb)


if __name__ == "__main__":
    # Small shapes consistent with the module: seq_len=8, d_model=32.
    batch, seq_len, d_model = 2, 8, 32

    key = jax.random.PRNGKey(0)
    k_emb, k_x = jax.random.split(key)

    # Deterministic parameter init (mimics torch.randn((seq_len, d_model))).
    emb = jax.random.normal(k_emb, (seq_len, d_model), dtype=jnp.float32)
    # Example input (unused by the forward, as in the PyTorch module).
    x = jax.random.normal(k_x, (batch, seq_len, d_model), dtype=jnp.float32)

    out = learnable_positional_encoding(x, emb)
    out = jax.block_until_ready(out)

    assert out.shape == (seq_len, d_model)
    assert out.dtype == emb.dtype
    assert jnp.allclose(out, emb), "kernel output does not match emb"

    print("KERNEL_OK")
</pallas_src>

<mosaic_0001>
module attributes {stable_mosaic.version = 11 : i64} {
  func.func @_copy_kernel(%arg0: i32, %arg1: memref<2x128xf32, #tpu.memory_space<vmem>>, %arg2: memref<2x128xf32, #tpu.memory_space<vmem>>) attributes {dimension_semantics = [#tpu.dimension_semantics<parallel>], iteration_bounds = array<i64: 1>, scalar_prefetch = 0 : i64, scratch_operands = 0 : i64, tpu.core_type = #tpu.core_type<tc>, window_params = [{transform_indices = @transform_0, window_bounds = array<i64: 2, 128>}, {transform_indices = @transform_1, window_bounds = array<i64: 2, 128>}]} {
    %c0 = arith.constant 0 : index
    %c0_0 = arith.constant 0 : index
    %0 = vector.load %arg1[%c0, %c0_0] : memref<2x128xf32, #tpu.memory_space<vmem>>, vector<2x128xf32>
    %c0_1 = arith.constant 0 : index
    %c0_2 = arith.constant 0 : index
    %1 = vector.load %arg2[%c0_1, %c0_2] : memref<2x128xf32, #tpu.memory_space<vmem>>, vector<2x128xf32>
    tpu.vector_store %arg2[%c0_1, %c0_2], %0 {strides = array<i32>} : memref<2x128xf32, #tpu.memory_space<vmem>>, vector<2x128xf32>,
    return
  }
  func.func @transform_0(%arg0: i32) -> (i32, i32) {
    %c0_i32 = arith.constant 0 : i32
    %c0_i32_0 = arith.constant 0 : i32
    return %arg0, %c0_i32 : i32, i32
  }
  func.func @transform_1(%arg0: i32) -> (i32, i32) {
    %c0_i32 = arith.constant 0 : i32
    %c0_i32_0 = arith.constant 0 : i32
    return %arg0, %c0_i32 : i32, i32
  }
}

</mosaic_0001>

<llo_original>
// kernel: tpu_custom_call.1
$region0: #{tpu_custom_call.1}
  #allocation0 [shape = 'u32[]', space=smem, size = 0x4, offset = 0x4, fixed_abs, tag = 'smem constant byte address 0x4 - core index']
  #allocation1 [shape = 'u32[144,128]{1,0:T(1,128)}', space=vmem, size = 0x12000, scoped, tag = 'internal scratch']
  %s0 = inlined_call_operand.hbm [shape: f32[2,128], index: 0, kind: input, shape index: {}]
  %s1 = inlined_call_operand.hbm [shape: f32[2,128], index: 1, kind: output, shape index: {}]
  %s2 = sld [smem:[#allocation0]]
  $region18: #{tpu_custom_call.1} parent=0
    _
  %s4 = ssub.s32 1, %s2
  %s5 = scalar_select 0, %s4, %s2
  $region1: #{tpu_custom_call.1} parent=0
    #allocation2 [shape = 'u8[1024]{0}', space=vmem, size = 0x400, scoped, tag = 'input window, operand 0, single buffered']
    #allocation3 [shape = 's32[1]{0}', space=sflag, size = 0x4, scoped, tag = 'scoped memory for tpu_custom_call.1']
    #allocation4 [shape = 's32[1]{0}', space=sflag, size = 0x4, scoped, tag = 'scoped memory for tpu_custom_call.1']
    #allocation5 [shape = 'u8[1024]{0}', space=vmem, size = 0x400, scoped, tag = 'output window, operand 0, single buffered']
    %6 = vsyncpa [#allocation3], 0
    %7 = vsyncpa [#allocation4], 0
    // Predicated region
    $region2: #{tpu_custom_call.1} parent=1 // pred_check
      _
    $region3: #{tpu_custom_call.1} parent=1 // pred_check_branch
      %9 = sbr.rel (0) target = $region5
    $region4: #{tpu_custom_call.1} parent=1 // pred_region
      %s11 = ssub.s32 32, 32
      %12 = vsyncadd [#allocation3], %s11
      %s14 = sshll.u32 [#allocation2], 4
      %s15 = int_to_ptr.vmem [resolvable:$true] %s14
      %17 = dma.hbm_to_vmem [thread:$0]  %s0, 32, %s15, [#allocation3]
    $region5: #{tpu_custom_call.1} parent=1 // pred_fallthru
      _
    // Predicated region
    $region6: #{tpu_custom_call.1} parent=1 // pred_check
      _
    $region7: #{tpu_custom_call.1} parent=1 // pred_check_branch
      %19 = sbr.rel (0) target = $region9
    $region8: #{tpu_custom_call.1} parent=1 // pred_region
      %20 = dma.done [#allocation3], 32
    $region9: #{tpu_custom_call.1} parent=1 // pred_fallthru
      _
    %v21 = vld [vmem:[#allocation2] sm:$0x3]
    %22 = vst [vmem:[#allocation5] sm:$0x3] %v21
    // Predicated region
    $region10: #{tpu_custom_call.1} parent=1 // pred_check
      _
    $region11: #{tpu_custom_call.1} parent=1 // pred_check_branch
      %24 = sbr.rel (0) target = $region13
    $region12: #{tpu_custom_call.1} parent=1 // pred_region
      %s26 = ssub.s32 32, 32
      %27 = vsyncadd [#allocation4], %s26
      %s29 = sshll.u32 [#allocation5], 4
      %s30 = int_to_ptr.vmem [resolvable:$true] %s29
      %32 = dma.vmem_to_hbm [thread:$0]  %s30, 32, %s1, [#allocation4]
    $region13: #{tpu_custom_call.1} parent=1 // pred_fallthru
      _
    // Predicated region
    $region14: #{tpu_custom_call.1} parent=1 // pred_check
      _
    $region15: #{tpu_custom_call.1} parent=1 // pred_check_branch
      %34 = sbr.rel (0) target = $region17
    $region16: #{tpu_custom_call.1} parent=1 // pred_region
      %35 = dma.done [#allocation4], 32
    $region17: #{tpu_custom_call.1} parent=1 // pred_fallthru
      _
    %36 = vsyncpa [#allocation3], 1
    %37 = vsyncpa [#allocation4], 1

</llo_original>
